<compile_context>
chip_gen: v6e
topology: v6e:2x2x1
jax: 0.10.0
libtpu: 0.0.40
codegen_flags: <defaults>
</compile_context>

<pallas_src>
import functools

import jax
import jax.numpy as jnp
from jax.experimental import pallas as pl
from jax.experimental.pallas import tpu as pltpu


LANES = 128
SMALL_INPUT_BYTES = 1 << 20   # below this, XLA-fused jnp beats kernel-launch overhead


def _round_up(x, m):
    return ((x + m - 1) // m) * m


def _cdiv(a, b):
    return -(-a // b)


def _device_kind():
    try:
        return jax.devices()[0].device_kind.lower()
    except Exception:
        return ""


def _is_v7():
    kind = _device_kind()
    return ("v7" in kind) or ("tpu7" in kind)


def _block_byte_budget():
    """Per-input block byte budget, tuned per TPU generation."""
    kind = _device_kind()
    if ("v7" in kind) or ("tpu7" in kind):
        return 8 << 20            # 2 in x 2 buf x 8 MiB = 32 MiB, fits 64 MiB VMEM w/ raised limit
    if ("v5 lite" in kind) or ("v5e" in kind) or ("v5lite" in kind):
        return 2 << 20            # 8 MiB double-buffered; raise scoped limit past 16 MiB default
    return 4 << 20                # v6e & others: 16 MiB double-buffered, within 32 MiB default


def _vmem_limit_bytes(block_bytes):
    needed = 4 * block_bytes + (2 << 20)          # 2 inputs x 2 buffers + slack
    cap = (48 << 20) if _is_v7() else (100 << 20)  # respect v7x's 64 MiB physical VMEM
    return int(min(max(needed + (16 << 20), 32 << 20), cap))


def _pick_tile_rows(rows, itemsize, cap=None):
    """Byte-budgeted, dtype-aware tile height (multiple of 8 rows)."""
    budget = _block_byte_budget() // (LANES * itemsize)
    budget = max(64, (budget // 64) * 64)
    if cap is not None:
        budget = min(budget, max(8, (int(cap) // 8) * 8))
    tile = min(budget, _round_up(rows, 8))
    if tile >= 1024:
        # Keep large tiles a multiple of the 1024-row accumulation chunk.
        tile = min(budget, _round_up(tile, 1024))
    return tile


def _elem_loss_f32(x, y):
    """SmoothL1 with beta = 1.0, elementwise, in f32."""
    d = x.astype(jnp.float32) - y.astype(jnp.float32)
    ad = jnp.abs(d)
    return jnp.where(ad < 1.0, 0.5 * d * d, ad - 0.5)


def _make_smooth_l1_kernel(tile_rows, steps_per_split, total_tiles, rows_valid,
                           acc_rows, needs_guard):
    last_tile = total_tiles - 1
    rows_in_last = rows_valid - last_tile * tile_rows
    needs_mask = rows_in_last < tile_rows
    chunk_rows = 1024 if (tile_rows % 1024 == 0 and tile_rows > 1024) else tile_rows
    n_chunks = tile_rows // chunk_rows

    def kernel(x_ref, y_ref, out_ref, acc_ref):
        i = pl.program_id(0)     # parallel split (megacore on v7x)
        j = pl.program_id(1)     # sequential reduction steps within the split
        tile_idx = i * steps_per_split + j

        @pl.when(j == 0)
        def _():
            acc_ref[...] = jnp.zeros_like(acc_ref)

        def accumulate(mask_tail):
            # Static Python loop: static sub-block slices, bounded f32 temporaries,
            # and independent per-chunk reductions feeding the wide accumulator.
            for c in range(n_chunks):
                r0 = c * chunk_rows
                if mask_tail and r0 >= rows_in_last:
                    break   # whole chunk is Pallas block padding — contributes zero
                xs = x_ref[r0:r0 + chunk_rows, :].astype(jnp.float32)
                ys = y_ref[r0:r0 + chunk_rows, :].astype(jnp.float32)
                d = xs - ys
                ad = jnp.abs(d)
                elem = jnp.where(ad < 1.0, 0.5 * d * d, ad - 0.5)
                if mask_tail and (r0 + chunk_rows > rows_in_last):
                    row_id = jax.lax.broadcasted_iota(
                        jnp.int32, (chunk_rows, LANES), 0) + r0
                    elem = jnp.where(row_id < rows_in_last, elem, 0.0)
                acc_ref[...] += elem.reshape(
                    chunk_rows // acc_rows, acc_rows, LANES).sum(axis=0)

        if needs_mask:
            # Steady state (unmasked) vs. single masked final tile: the mask's
            # iota/compare/select only runs on the one partial tile.
            @pl.when(tile_idx < last_tile)
            def _():
                accumulate(False)

            @pl.when(tile_idx == last_tile)
            def _():
                accumulate(True)
        elif needs_guard:
            # Odd tile count split over 2 TensorCores: skip the overflow step.
            @pl.when(tile_idx < total_tiles)
            def _():
                accumulate(False)
        else:
            accumulate(False)

        @pl.when(j == pl.num_programs(1) - 1)
        def _():
            # Single cross-lane/XLU reduce + SMEM scalar store per split.
            out_ref[0, 0] = jnp.sum(acc_ref[...])

    return kernel


def _pallas_sum_loss(x2d, y2d, tile_rows_cap=None):
    """Sum of SmoothL1(beta=1) over a (rows, 128) lane-dense slab."""
    rows = x2d.shape[0]
    itemsize = jnp.dtype(x2d.dtype).itemsize

    tile_rows = _pick_tile_rows(rows, itemsize, tile_rows_cap)
    acc_rows = 64 if tile_rows % 64 == 0 else 8
    total_tiles = _cdiv(rows, tile_rows)

    # Always engage the 2-way split when there is more than one tile: halves
    # per-core work on v7x, near-zero cost on single-TC chips.
    num_split = 2 if total_tiles >= 2 else 1
    steps = _cdiv(total_tiles, num_split)
    needs_guard = num_split * steps != total_tiles

    kernel = _make_smooth_l1_kernel(tile_rows, steps, total_tiles, rows,
                                    acc_rows, needs_guard)

    if needs_guard:
        def in_map(i, j):
            return (jnp.minimum(i * steps + j, total_tiles - 1), 0)
    else:
        def in_map(i, j):
            return (i * steps + j, 0)

    block_bytes = tile_rows * LANES * itemsize

    partials = pl.pallas_call(
        kernel,
        out_shape=jax.ShapeDtypeStruct((num_split, 1), jnp.float32),
        grid_spec=pltpu.PrefetchScalarGridSpec(
            num_scalar_prefetch=0,
            grid=(num_split, steps),
            in_specs=[
                pl.BlockSpec((tile_rows, LANES), in_map),
                pl.BlockSpec((tile_rows, LANES), in_map),
            ],
            out_specs=pl.BlockSpec(
                (1, 1), lambda i, j: (i, 0),
                memory_space=pltpu.MemorySpace.SMEM),
            scratch_shapes=[pltpu.VMEM((acc_rows, LANES), jnp.float32)],
        ),
        compiler_params=pltpu.CompilerParams(
            dimension_semantics=("parallel", "arbitrary"),
            vmem_limit_bytes=_vmem_limit_bytes(block_bytes),
        ),
        cost_estimate=pl.CostEstimate(
            flops=8 * x2d.size,
            transcendentals=0,
            bytes_accessed=2 * x2d.size * itemsize + 8,
        ),
    )(x2d, y2d)

    return jnp.sum(partials)


@functools.partial(jax.jit,
                   static_argnames=("reduction", "force_pallas", "tile_rows_cap"))
def smooth_l1_loss(inp, target, reduction="mean", force_pallas=False,
                   tile_rows_cap=None):
    assert inp.shape == target.shape, "input/target shape mismatch"
    if reduction not in ("mean", "sum"):
        # TODO(synk): reduction='none' (per-element output) is not wired through
        # this scalar-accumulation kernel; 'mean'/'sum' cover the module default.
        raise NotImplementedError("reduction='none' not implemented")

    n_elem = inp.size
    itemsize = jnp.dtype(inp.dtype).itemsize

    flat_x = jnp.ravel(inp)
    flat_y = jnp.ravel(target)

    rows = n_elem // LANES
    use_jnp = (not force_pallas) and (n_elem * itemsize < SMALL_INPUT_BYTES)

    if use_jnp or rows == 0:
        total = jnp.sum(_elem_loss_f32(flat_x, flat_y))
    else:
        n_main = rows * LANES
        if n_main != n_elem:
            # TODO(synk): this prefix slice materializes a copy for sizes not
            # divisible by 128; a manual-DMA ragged path would avoid it.
            x_main = jax.lax.slice(flat_x, (0,), (n_main,))
            y_main = jax.lax.slice(flat_y, (0,), (n_main,))
        else:
            x_main, y_main = flat_x, flat_y

        x2d = x_main.reshape(rows, LANES)   # free reshape when already aligned
        y2d = y_main.reshape(rows, LANES)
        total = _pallas_sum_loss(x2d, y2d, tile_rows_cap)

        if n_main != n_elem:
            tail_x = jax.lax.slice(flat_x, (n_main,), (n_elem,))
            tail_y = jax.lax.slice(flat_y, (n_main,), (n_elem,))
            total = total + jnp.sum(_elem_loss_f32(tail_x, tail_y))

    if reduction == "mean":
        return total / jnp.float32(n_elem)
    return total


def _reference_smooth_l1(inp, target, reduction="mean"):
    elem = _elem_loss_f32(inp, target)
    return jnp.sum(elem) if reduction == "sum" else jnp.mean(elem)


if __name__ == "__main__":
    key = jax.random.PRNGKey(0)
    k1, k2, k3, k4 = jax.random.split(key, 4)

    # Primary test: small NCHW tensors matching the lanenet loss usage.
    shape = (2, 4, 16, 16)
    x = jax.random.normal(k1, shape, dtype=jnp.float32)
    y = jax.random.normal(k2, shape, dtype=jnp.float32)
    out = jax.block_until_ready(
        smooth_l1_loss(x, y, reduction="mean", force_pallas=True))
    ref = _reference_smooth_l1(x, y, "mean")
    assert jnp.allclose(out, ref, rtol=1e-5, atol=1e-6), (out, ref)

    # Multi-tile path: odd tile count -> 2-way split + overflow guard + masked
    # partial last tile (tiny tile cap keeps the test small: 37 rows, 8-row tiles).
    shape2 = (2, 4, 37, 16)   # 4736 elements = 37 rows of 128
    x2 = jax.random.normal(k3, shape2, dtype=jnp.float32)
    y2 = jax.random.normal(k4, shape2, dtype=jnp.float32)
    out2 = jax.block_until_ready(
        smooth_l1_loss(x2, y2, reduction="sum", force_pallas=True, tile_rows_cap=8))
    ref2 = _reference_smooth_l1(x2, y2, "sum")
    assert jnp.allclose(out2, ref2, rtol=1e-5, atol=1e-5), (out2, ref2)

    # Element count not divisible by 128: kernel on the aligned prefix, jnp tail.
    shape3 = (3, 5, 7, 11)    # 1155 elements
    x3 = jax.random.normal(k1, shape3, dtype=jnp.float32)
    y3 = jax.random.normal(k2, shape3, dtype=jnp.float32)
    out3 = jax.block_until_ready(
        smooth_l1_loss(x3, y3, reduction="mean", force_pallas=True))
    ref3 = _reference_smooth_l1(x3, y3, "mean")
    assert jnp.allclose(out3, ref3, rtol=1e-5, atol=1e-6), (out3, ref3)

    print("KERNEL_OK")
</pallas_src>

<mosaic_0001>
module attributes {stable_mosaic.version = 11 : i64} {
  func.func @kernel(%arg0: i32, %arg1: i32, %arg2: memref<16x128xf32, #tpu.memory_space<vmem>>, %arg3: memref<16x128xf32, #tpu.memory_space<vmem>>, %arg4: memref<1x1xf32, #tpu.memory_space<smem>>, %arg5: memref<8x128xf32, #tpu.memory_space<vmem>>) attributes {dimension_semantics = [#tpu.dimension_semantics<parallel>, #tpu.dimension_semantics<arbitrary>], iteration_bounds = array<i64: 1, 1>, scalar_prefetch = 0 : i64, scratch_operands = 1 : i64, tpu.core_type = #tpu.core_type<tc>, window_params = [{transform_indices = @transform_0, window_bounds = array<i64: 16, 128>}, {transform_indices = @transform_1, window_bounds = array<i64: 16, 128>}, {transform_indices = @transform_2, window_bounds = array<i64: 1, 1>}]} {
    %c0_i32 = arith.constant 0 : i32
    %0 = arith.cmpi eq, %arg1, %c0_i32 : i32
    %1 = arith.extui %0 : i1 to i32
    %c0_i32_0 = arith.constant 0 : i32
    %2 = arith.cmpi ne, %1, %c0_i32_0 : i32
    scf.if %2 {
      %cst_13 = arith.constant 0.000000e+00 : f32
      %23 = vector.broadcast %cst_13 : f32 to vector<8x128xf32>
      %c0_14 = arith.constant 0 : index
      %c0_15 = arith.constant 0 : index
      %24 = vector.load %arg5[%c0_14, %c0_15] : memref<8x128xf32, #tpu.memory_space<vmem>>, vector<8x128xf32>
      tpu.vector_store %arg5[%c0_14, %c0_15], %23 {strides = array<i32>} : memref<8x128xf32, #tpu.memory_space<vmem>>, vector<8x128xf32>,
    } else {
    }
    %c0 = arith.constant 0 : index
    %c0_1 = arith.constant 0 : index
    %3 = vector.load %arg2[%c0, %c0_1] : memref<16x128xf32, #tpu.memory_space<vmem>>, vector<16x128xf32>
    %c0_2 = arith.constant 0 : index
    %c0_3 = arith.constant 0 : index
    %4 = vector.load %arg3[%c0_2, %c0_3] : memref<16x128xf32, #tpu.memory_space<vmem>>, vector<16x128xf32>
    %5 = arith.subf %3, %4 : vector<16x128xf32>
    %6 = math.absf %5 : vector<16x128xf32>
    %cst = arith.constant 1.000000e+00 : f32
    %7 = vector.broadcast %cst : f32 to vector<16x128xf32>
    %8 = arith.cmpf olt, %6, %7 : vector<16x128xf32>
    %cst_4 = arith.constant 5.000000e-01 : f32
    %9 = vector.broadcast %cst_4 : f32 to vector<16x128xf32>
    %10 = arith.mulf %9, %5 : vector<16x128xf32>
    %11 = arith.mulf %10, %5 : vector<16x128xf32>
    %cst_5 = arith.constant 5.000000e-01 : f32
    %12 = vector.broadcast %cst_5 : f32 to vector<16x128xf32>
    %13 = arith.subf %6, %12 : vector<16x128xf32>
    %14 = arith.select %8, %11, %13 : vector<16x128xi1>, vector<16x128xf32>
    %c0_6 = arith.constant 0 : index
    %c0_7 = arith.constant 0 : index
    %15 = vector.load %arg5[%c0_6, %c0_7] : memref<8x128xf32, #tpu.memory_space<vmem>>, vector<8x128xf32>
    %16 = vector.shape_cast %14 : vector<16x128xf32> to vector<2x8x128xf32>
    %cst_8 = arith.constant dense<0.000000e+00> : vector<8x128xf32>
    %17 = vector.multi_reduction <add>, %16, %cst_8 [0] : vector<2x8x128xf32> to vector<8x128xf32>
    %18 = arith.addf %15, %17 : vector<8x128xf32>
    %c0_9 = arith.constant 0 : index
    %c0_10 = arith.constant 0 : index
    %19 = vector.load %arg5[%c0_9, %c0_10] : memref<8x128xf32, #tpu.memory_space<vmem>>, vector<8x128xf32>
    tpu.vector_store %arg5[%c0_9, %c0_10], %18 {strides = array<i32>} : memref<8x128xf32, #tpu.memory_space<vmem>>, vector<8x128xf32>,
    %c0_i32_11 = arith.constant 0 : i32
    %20 = arith.cmpi eq, %arg1, %c0_i32_11 : i32
    %21 = arith.extui %20 : i1 to i32
    %c0_i32_12 = arith.constant 0 : i32
    %22 = arith.cmpi ne, %21, %c0_i32_12 : i32
    scf.if %22 {
      %c0_13 = arith.constant 0 : index
      %c0_14 = arith.constant 0 : index
      %23 = vector.load %arg5[%c0_13, %c0_14] : memref<8x128xf32, #tpu.memory_space<vmem>>, vector<8x128xf32>
      %24 = vector.shape_cast %23 : vector<8x128xf32> to vector<1x8x128xf32>
      %cst_15 = arith.constant dense<0.000000e+00> : vector<1xf32>
      %25 = vector.multi_reduction <add>, %24, %cst_15 [1, 2] : vector<1x8x128xf32> to vector<1xf32>
      %26 = vector.shape_cast %25 : vector<1xf32> to vector<1x1x1xf32>
      %27 = vector.extract %26[0, 0, 0] : f32 from vector<1x1x1xf32>
      %c0_16 = arith.constant 0 : index
      %c0_17 = arith.constant 0 : index
      %28 = memref.load %arg4[%c0_16, %c0_17] : memref<1x1xf32, #tpu.memory_space<smem>>
      memref.store %27, %arg4[%c0_16, %c0_17] : memref<1x1xf32, #tpu.memory_space<smem>>
    } else {
    }
    return
  }
  func.func @transform_0(%arg0: i32, %arg1: i32) -> (i32, i32) {
    %c1_i32 = arith.constant 1 : i32
    %0 = arith.muli %arg0, %c1_i32 : i32
    %1 = arith.addi %0, %arg1 : i32
    %c0_i32 = arith.constant 0 : i32
    %c0_i32_0 = arith.constant 0 : i32
    return %1, %c0_i32 : i32, i32
  }
  func.func @transform_1(%arg0: i32, %arg1: i32) -> (i32, i32) {
    %c1_i32 = arith.constant 1 : i32
    %0 = arith.muli %arg0, %c1_i32 : i32
    %1 = arith.addi %0, %arg1 : i32
    %c0_i32 = arith.constant 0 : i32
    %c0_i32_0 = arith.constant 0 : i32
    return %1, %c0_i32 : i32, i32
  }
  func.func @transform_2(%arg0: i32, %arg1: i32) -> (i32, i32) {
    %c0_i32 = arith.constant 0 : i32
    %c0_i32_0 = arith.constant 0 : i32
    return %arg0, %c0_i32 : i32, i32
  }
}

</mosaic_0001>

<llo_original>
// kernel: smooth_l1_loss.1
$region0: #{smooth_l1_loss.1}
  #allocation0 [shape = 'u32[]', space=smem, size = 0x4, offset = 0x4, fixed_abs, tag = 'smem constant byte address 0x4 - core index']
  #allocation1 [shape = 'u32[144,128]{1,0:T(1,128)}', space=vmem, size = 0x12000, scoped, tag = 'internal scratch']
  #allocation2 [shape = 'f32[8,128]{1,0:T(8,128)}', space=vmem, size = 0x1000, scoped, tag = 'scratch operand']
  %s0 = inlined_call_operand.vmem [shape: f32[16,128], index: 0, kind: input, shape index: {}]
  %s1 = inlined_call_operand.vmem [shape: f32[16,128], index: 1, kind: input, shape index: {}]
  %s2 = inlined_call_operand.hbm [shape: f32[1,1], index: 2, kind: output, shape index: {}]
  %s3 = sld [smem:[#allocation0]]
  $region26: #{smooth_l1_loss.1} parent=0
    _
  %s5 = ssub.s32 1, %s3
  %s6 = scalar_select 0, %s5, %s3
  $region1: #{smooth_l1_loss.1} parent=0
    #allocation3 [shape = 'u8[512]{0}', space=smem, size = 0x200, scoped, tag = 'output window, operand 0, single buffered']
    #allocation4 [shape = 's32[1]{0}', space=sflag, size = 0x4, scoped, tag = 'scoped memory for smooth_l1_loss.1']
    %7 = vsyncpa [#allocation4], 0
    // Predicated region
    $region2: #{smooth_l1_loss.1} parent=1 // pred_check
      _
    $region3: #{smooth_l1_loss.1} parent=1 // pred_check_branch
      %9 = sbr.rel (0) target = $region5
    $region4: #{smooth_l1_loss.1} parent=1 // pred_region
      %s10 = sadd.s32 0, 0
      %s11 = smul.u32 2, %s10
      %p12 = scmp.lt.s32.totalorder %s11, 1
      %s13 = scalar_select %p12, %s11, 1
      %s14 = smul.addr %s13, 8
      %s15 = scalar_lea.vmem %s0, %s14
      %s16 = sadd.s32 0, 0
      %s17 = smul.u32 2, %s16
    $region5: #{smooth_l1_loss.1} parent=1 // pred_fallthru
      _
    // Predicated region
    $region6: #{smooth_l1_loss.1} parent=1 // pred_check
      _
    $region7: #{smooth_l1_loss.1} parent=1 // pred_check_branch
      %19 = sbr.rel (0) target = $region9
    $region8: #{smooth_l1_loss.1} parent=1 // pred_region
      %s20 = sadd.s32 0, 0
      %s21 = smul.u32 2, %s20
      %p22 = scmp.lt.s32.totalorder %s21, 1
      %s23 = scalar_select %p22, %s21, 1
      %s24 = smul.addr %s23, 8
      %s25 = scalar_lea.vmem %s1, %s24
      %s26 = sadd.s32 0, 0
      %s27 = smul.u32 2, %s26
    $region9: #{smooth_l1_loss.1} parent=1 // pred_fallthru
      _
    %s28 = sadd.s32 0, 0
    %s29 = smul.u32 2, %s28
    %p30 = scmp.lt.s32.totalorder %s29, 1
    %s31 = scalar_select %p30, %s29, 1
    %s32 = smul.addr %s31, 8
    %s33 = scalar_lea.vmem %s0, %s32
    %s34 = sadd.s32 0, 0
    %s35 = smul.u32 2, %s34
    %p36 = scmp.lt.s32.totalorder %s35, 1
    %s37 = scalar_select %p36, %s35, 1
    %s38 = smul.addr %s37, 8
    %s39 = scalar_lea.vmem %s1, %s38
    %s40 = sadd.s32 0, 0
    %s41 = smul.u32 2, %s40
    %p42 = scmp.lt.s32.totalorder %s41, 1
    %s43 = scalar_select %p42, %s41, 1
    %s44 = smul.addr %s43, 8
    %s45 = scalar_lea.vmem %s0, %s44
    %s46 = sadd.s32 0, 0
    %s47 = smul.u32 2, %s46
    %s48 = sadd.s32 0, 0
    %s49 = smul.u32 2, %s48
    %p50 = scmp.lt.s32.totalorder %s49, 1
    %s51 = scalar_select %p50, %s49, 1
    %s52 = smul.addr %s51, 8
    %s53 = scalar_lea.vmem %s1, %s52
    %s54 = sadd.s32 0, 0
    %s55 = smul.u32 2, %s54
    %p56 = scmp.eq.s32.totalorder 0, 0
    // Predicated region
    $region10: #{smooth_l1_loss.1} parent=1 // pred_check
      %p57 = pneg %p56
    $region11: #{smooth_l1_loss.1} parent=1 // pred_check_branch
      %59 = sbr.rel (%p57) target = $region13
    $region12: #{smooth_l1_loss.1} parent=1 // pred_region
      %60 = vst [vmem:[#allocation2] sm:$0xff] 0.0
    $region13: #{smooth_l1_loss.1} parent=1 // pred_fallthru
      _
    %v61 = vld [vmem:[%s45] sm:$0xff]
    %v62 = vld [vmem:[%s45 + $0x8] sm:$0xff]
    %v63 = vld [vmem:[%s53] sm:$0xff]
    %v64 = vld [vmem:[%s53 + $0x8] sm:$0xff]
    %v65 = vsub.f32 %v61, %v63
    %v66 = vsub.f32 %v62, %v64
    %v67 = vand.u32 2147483647, %v65
    %v68 = vand.u32 2147483647, %v66
    %vm69 = vcmp.lt.f32.partialorder %v67, 1.0
    %vm70 = vcmp.lt.f32.partialorder %v68, 1.0
    %v71 = vmul.f32 %v65, 0.5
    %v72 = vmul.f32 %v66, 0.5
    %v73 = vmul.f32 %v71, %v65
    %v74 = vmul.f32 %v72, %v66
    %v75 = vsub.f32 %v67, 0.5
    %v76 = vsub.f32 %v68, 0.5
    %v77 = vsel %vm69, %v73, %v75
    %v78 = vsel %vm70, %v74, %v76
    %v79 = vld [vmem:[#allocation2] sm:$0xff]
    %v80 = vadd.f32 %v77, %v78
    %v81 = vadd.f32 %v79, %v80
    %82 = vst [vmem:[#allocation2] sm:$0xff] %v81
    // Predicated region
    $region14: #{smooth_l1_loss.1} parent=1 // pred_check
      %p83 = pneg %p56
    $region15: #{smooth_l1_loss.1} parent=1 // pred_check_branch
      %85 = sbr.rel (%p83) target = $region17
    $region16: #{smooth_l1_loss.1} parent=1 // pred_region
      %v86 = vld [vmem:[#allocation2] sm:$0xff]
      %87 = vadd.xlane.f32.xlu0 %v86
      %v88 = vpop.xlane.xlu0 %87
      %v89 = vrot.slane %v88, 4
      %v90 = vadd.f32 %v88, %v89
      %v91 = vrot.slane %v90, 2
      %v92 = vadd.f32 %v90, %v91
      %v93 = vrot.slane %v92, 1
      %v94 = vadd.f32 %v92, %v93
      %s95 = vtos %v94
      %s96 = scalar_lea.smem [#allocation3], 0
      %97 = sst [smem:[%s96]] %s95
    $region17: #{smooth_l1_loss.1} parent=1 // pred_fallthru
      _
    // Predicated region
    $region18: #{smooth_l1_loss.1} parent=1 // pred_check
      _
    $region19: #{smooth_l1_loss.1} parent=1 // pred_check_branch
      %99 = sbr.rel (0) target = $region21
    $region20: #{smooth_l1_loss.1} parent=1 // pred_region
      %s101 = ssub.s32 16, 16
      %102 = vsyncadd [#allocation4], %s101
      %105 = dma.smem_to_hbm [#allocation3], 16, %s2, [#allocation4]
    $region21: #{smooth_l1_loss.1} parent=1 // pred_fallthru
      _
    // Predicated region
    $region22: #{smooth_l1_loss.1} parent=1 // pred_check
      _
    $region23: #{smooth_l1_loss.1} parent=1 // pred_check_branch
      %107 = sbr.rel (0) target = $region25
    $region24: #{smooth_l1_loss.1} parent=1 // pred_region
      %108 = dma.done [#allocation4], 16
    $region25: #{smooth_l1_loss.1} parent=1 // pred_fallthru
      _
    %109 = sfence
    %110 = vsyncpa [#allocation4], 1

</llo_original>
